<compile_context>
chip_gen: v6e
topology: v6e:2x2x1
jax: 0.10.0
libtpu: 0.0.40
codegen_flags: <defaults>
</compile_context>

<pallas_src>
from functools import partial

import jax
import jax.numpy as jnp
from jax import lax
from jax.experimental import pallas as pl
from jax.experimental.pallas import tpu as pltpu


# ----------------------------------------------------------------------------
# Kernel 1: qkv projection  qkv = x @ W_qkv   (no bias)
#
# Grid over rows (M) only.  The whole contraction (K = C) and the whole weight
# (K, 3C) live in VMEM, so the weight is DMA'd exactly once and x / qkv are
# streamed exactly once.  No padding, no post-slice.
# ----------------------------------------------------------------------------
def _qkv_matmul_kernel(x_ref, w_ref, o_ref):
    o_ref[...] = jnp.dot(
        x_ref[...], w_ref[...], preferred_element_type=jnp.float32
    ).astype(o_ref.dtype)


def _qkv_matmul(x2d, w, *, out_dtype, tm=256):
    M, K = x2d.shape
    _, N3 = w.shape
    tm = M if M <= tm else tm          # 256 is a multiple of 8; last block may be ragged
    # TODO(synk): for very large C (>= ~1280) split the 3C axis (or single-buffer
    # the resident weight) so the weight block stays inside v5e/v7x scoped VMEM.
    return pl.pallas_call(
        _qkv_matmul_kernel,
        out_shape=jax.ShapeDtypeStruct((M, N3), out_dtype),
        grid=(pl.cdiv(M, tm),),
        in_specs=[
            pl.BlockSpec((tm, K), lambda i: (i, 0)),
            pl.BlockSpec((K, N3), lambda i: (0, 0)),   # resident weight, fetched once
        ],
        out_specs=pl.BlockSpec((tm, N3), lambda i: (i, 0)),
        compiler_params=pltpu.CompilerParams(
            dimension_semantics=("parallel",)
        ),
    )(x2d, w)


# ----------------------------------------------------------------------------
# Kernel 2: fused multi-head attention + output projection + bias.
# One batch element (all heads) per grid step; W_proj / b_proj stay resident.
# ----------------------------------------------------------------------------
def _attn_proj_kernel(qkv_ref, w_proj_ref, b_proj_ref, o_ref, slab_ref,
                      *, num_heads, head_dim):
    # qkv_ref: (N, 3C) bf16, columns ordered [q | k | v], head-major within
    # each block (matches nn.Linear(dim, 3*dim) + reshape(B, N, 3, H, D)).
    # The softmax scale is already folded into the q columns of W_qkv.
    C = num_heads * head_dim
    qkv = qkv_ref[...]
    for h in range(num_heads):
        q = qkv[:, h * head_dim:(h + 1) * head_dim]                    # (N, D)
        k = qkv[:, C + h * head_dim:C + (h + 1) * head_dim]            # (N, D)
        v = qkv[:, 2 * C + h * head_dim:2 * C + (h + 1) * head_dim]    # (N, D)
        # q @ k^T by contracting the last dims (no explicit transpose).
        s = lax.dot_general(
            q, k, (((1,), (1,)), ((), ())), preferred_element_type=jnp.float32
        )                                                              # (N, N) f32
        m = jnp.max(s, axis=-1, keepdims=True)
        p = jnp.exp(s - m)                                             # unnormalized
        # TODO(synk): on v6e/v7x a bf16 exp path roughly halves the EUP/VPU
        # cost here; kept in f32 so one kernel runs well on v5e too.
        l = jnp.sum(p, axis=-1, keepdims=True)
        # Deferred normalization: scale the (N, D) result, not the (N, N)
        # probability matrix (N*D instead of N*N multiplies).
        o_h = jnp.dot(p.astype(v.dtype), v, preferred_element_type=jnp.float32)
        o_h = o_h * pl.reciprocal(l, approx=True)
        # Each head written straight into the resident output slab: no H-way
        # concatenate, bounded live ranges.
        slab_ref[:, h * head_dim:(h + 1) * head_dim] = o_h.astype(slab_ref.dtype)
    # Fused output projection with the resident W_proj / bias: the merged
    # (N, C) attention output never round-trips through HBM.
    y = jnp.dot(slab_ref[...], w_proj_ref[...], preferred_element_type=jnp.float32)
    o_ref[...] = (y + b_proj_ref[...].astype(jnp.float32)).astype(o_ref.dtype)


def _attention_proj(qkv_bnc, w_proj, b_proj, num_heads, head_dim, out_dtype):
    B, N, threeC = qkv_bnc.shape
    C = num_heads * head_dim
    # TODO(synk): for long sequences (N >= ~512) add a query-tile grid axis and
    # flash-style online-softmax KV tiling instead of the full (N, N) scores;
    # also helps megacore utilization on v7x when B is small.
    return pl.pallas_call(
        partial(_attn_proj_kernel, num_heads=num_heads, head_dim=head_dim),
        out_shape=jax.ShapeDtypeStruct((B, N, C), out_dtype),
        grid=(B,),
        in_specs=[
            pl.BlockSpec((None, N, threeC), lambda b: (b, 0, 0)),
            pl.BlockSpec((C, C), lambda b: (0, 0)),        # resident W_proj
            pl.BlockSpec((1, C), lambda b: (0, 0)),        # resident bias
        ],
        out_specs=pl.BlockSpec((None, N, C), lambda b: (b, 0, 0)),
        scratch_shapes=[pltpu.VMEM((N, C), jnp.bfloat16)],
        compiler_params=pltpu.CompilerParams(
            dimension_semantics=("parallel",)
        ),
    )(qkv_bnc, w_proj, b_proj)


# ----------------------------------------------------------------------------
# Forward
# ----------------------------------------------------------------------------
def attention_forward(x, w_qkv, w_proj, b_proj, num_heads):
    """x: (B, N, C) -> (B, N, C)."""
    B, N, C = x.shape
    H = num_heads
    assert C % H == 0
    D = C // H
    scale = D ** (-0.5)
    in_dtype = x.dtype

    # W_qkv columns must be ordered [q | k | v] head-major (the standard
    # nn.Linear(dim, 3*dim) layout); the softmax scale is folded into the q
    # columns in f32 at trace time so the kernel never scales (N, N) scores.
    assert w_qkv.shape == (C, 3 * C) and w_proj.shape == (C, C)
    col_scale = jnp.concatenate(
        [jnp.full((C,), scale, dtype=w_qkv.dtype),
         jnp.ones((2 * C,), dtype=w_qkv.dtype)]
    )
    w_qkv_bf = (w_qkv * col_scale[None, :]).astype(jnp.bfloat16)
    w_proj_bf = w_proj.astype(jnp.bfloat16)
    x_bf = x.reshape(B * N, C).astype(jnp.bfloat16)

    # 1) qkv projection (weight resident, grid over rows only, no bias, no pad).
    qkv = _qkv_matmul(x_bf, w_qkv_bf, out_dtype=jnp.bfloat16)
    qkv = qkv.reshape(B, N, 3 * C)          # free reshape, natural layout

    # 2) fused multi-head attention + output projection + bias.
    return _attention_proj(qkv, w_proj_bf, b_proj.astype(jnp.float32),
                           H, D, in_dtype)


# ----------------------------------------------------------------------------
# Pure-JAX reference (f32) for sanity check
# ----------------------------------------------------------------------------
def attention_reference(x, w_qkv, w_proj, b_proj, num_heads):
    B, N, C = x.shape
    H = num_heads
    D = C // H
    scale = D ** (-0.5)
    qkv = (x.reshape(B * N, C) @ w_qkv).reshape(B, N, 3, H, D)
    qkv = jnp.transpose(qkv, (2, 0, 3, 1, 4))
    q, k, v = qkv[0], qkv[1], qkv[2]
    attn = jnp.einsum("bhnd,bhmd->bhnm", q, k) * scale
    attn = jax.nn.softmax(attn, axis=-1)
    o = jnp.einsum("bhnm,bhmd->bhnd", attn, v)
    o = jnp.transpose(o, (0, 2, 1, 3)).reshape(B * N, C)
    return (o @ w_proj + b_proj).reshape(B, N, C)


# ----------------------------------------------------------------------------
# Main
# ----------------------------------------------------------------------------
if __name__ == "__main__":
    B, N, C = 2, 8, 32
    num_heads = 4  # head_dim = 8

    key = jax.random.PRNGKey(0)
    kx, kqkv, kproj, kb = jax.random.split(key, 4)

    x = jax.random.normal(kx, (B, N, C), dtype=jnp.float32)
    # Shapes match nn.Linear(dim, dim*3, bias=False) and nn.Linear(dim, dim),
    # stored pre-transposed for right-multiplication.
    w_qkv = jax.random.normal(kqkv, (C, 3 * C), dtype=jnp.float32) * 0.05
    w_proj = jax.random.normal(kproj, (C, C), dtype=jnp.float32) * 0.05
    b_proj = jax.random.normal(kb, (1, C), dtype=jnp.float32) * 0.05

    out = attention_forward(x, w_qkv, w_proj, b_proj, num_heads)
    out = jax.block_until_ready(out)

    ref = attention_reference(x, w_qkv, w_proj, b_proj, num_heads)
    assert out.shape == (B, N, C)
    max_err = jnp.max(jnp.abs(out - ref))
    # bf16 MXU operands + approx reciprocal vs f32 reference -> bf16 tolerance.
    assert jnp.allclose(out, ref, atol=2e-2, rtol=2e-2), (
        f"mismatch vs reference (max abs err {max_err})"
    )

    print("KERNEL_OK")
</pallas_src>

<mosaic_0001>
module attributes {stable_mosaic.version = 11 : i64} {
  func.func @_qkv_matmul_kernel(%arg0: i32, %arg1: memref<16x32xbf16, #tpu.memory_space<vmem>>, %arg2: memref<32x96xbf16, #tpu.memory_space<vmem>>, %arg3: memref<16x96xbf16, #tpu.memory_space<vmem>>) attributes {dimension_semantics = [#tpu.dimension_semantics<parallel>], iteration_bounds = array<i64: 1>, scalar_prefetch = 0 : i64, scratch_operands = 0 : i64, tpu.core_type = #tpu.core_type<tc>, window_params = [{transform_indices = @transform_0, window_bounds = array<i64: 16, 32>}, {pipeline_mode = #tpu.pipeline_mode<synchronous>, transform_indices = @transform_1, window_bounds = array<i64: 32, 96>}, {transform_indices = @transform_2, window_bounds = array<i64: 16, 96>}]} {
    %c0 = arith.constant 0 : index
    %c0_0 = arith.constant 0 : index
    %0 = vector.load %arg1[%c0, %c0_0] : memref<16x32xbf16, #tpu.memory_space<vmem>>, vector<16x32xbf16>
    %c0_1 = arith.constant 0 : index
    %c0_2 = arith.constant 0 : index
    %1 = vector.load %arg2[%c0_1, %c0_2] : memref<32x96xbf16, #tpu.memory_space<vmem>>, vector<32x96xbf16>
    %cst = arith.constant dense<0.000000e+00> : vector<16x96xf32>
    %2 = tpu.matmul %0, %1, %cst {dimension_numbers = #tpu.dot_dimension_numbers<[1], [0], [0], [1], [0, 0, 1, 1], [], []>} : vector<16x32xbf16>, vector<32x96xbf16>, vector<16x96xf32> -> vector<16x96xf32>
    %3 = arith.truncf %2 : vector<16x96xf32> to vector<16x96xbf16>
    %c0_3 = arith.constant 0 : index
    %c0_4 = arith.constant 0 : index
    %4 = vector.load %arg3[%c0_3, %c0_4] : memref<16x96xbf16, #tpu.memory_space<vmem>>, vector<16x96xbf16>
    tpu.vector_store %arg3[%c0_3, %c0_4], %3 {strides = array<i32>} : memref<16x96xbf16, #tpu.memory_space<vmem>>, vector<16x96xbf16>,
    return
  }
  func.func @transform_0(%arg0: i32) -> (i32, i32) {
    %c0_i32 = arith.constant 0 : i32
    %c0_i32_0 = arith.constant 0 : i32
    return %arg0, %c0_i32 : i32, i32
  }
  func.func @transform_1(%arg0: i32) -> (i32, i32) {
    %c0_i32 = arith.constant 0 : i32
    %c0_i32_0 = arith.constant 0 : i32
    %c0_i32_1 = arith.constant 0 : i32
    return %c0_i32, %c0_i32_0 : i32, i32
  }
  func.func @transform_2(%arg0: i32) -> (i32, i32) {
    %c0_i32 = arith.constant 0 : i32
    %c0_i32_0 = arith.constant 0 : i32
    return %arg0, %c0_i32 : i32, i32
  }
}

</mosaic_0001>

<llo_original>
// kernel: tpu_custom_call.1
$region0: #{tpu_custom_call.1}
  #allocation0 [shape = 'u32[]', space=smem, size = 0x4, offset = 0x4, fixed_abs, tag = 'smem constant byte address 0x4 - core index']
  #allocation1 [shape = 'u32[144,128]{1,0:T(1,128)}', space=vmem, size = 0x12000, scoped, tag = 'internal scratch']
  %s0 = inlined_call_operand.hbm [shape: bf16[16,32], index: 0, kind: input, shape index: {}]
  %s1 = inlined_call_operand.hbm [shape: bf16[32,96], index: 1, kind: input, shape index: {}]
  %s2 = inlined_call_operand.hbm [shape: bf16[16,96], index: 2, kind: output, shape index: {}]
  %s3 = sld [smem:[#allocation0]]
  $region26: #{tpu_custom_call.1} parent=0
    _
  %s5 = ssub.s32 1, %s3
  %s6 = scalar_select 0, %s5, %s3
  $region1: #{tpu_custom_call.1} parent=0
    #allocation2 [shape = 'u8[4096]{0}', space=vmem, size = 0x1000, scoped, tag = 'input window, operand 0, single buffered']
    #allocation3 [shape = 's32[1]{0}', space=sflag, size = 0x4, scoped, tag = 'scoped memory for tpu_custom_call.1']
    #allocation4 [shape = 's32[1]{0}', space=sflag, size = 0x4, scoped, tag = 'scoped memory for tpu_custom_call.1']
    #allocation5 [shape = 'u8[8192]{0}', space=vmem, size = 0x2000, scoped, tag = 'input window, operand 1, single buffered']
    #allocation6 [shape = 's32[1]{0}', space=sflag, size = 0x4, scoped, tag = 'scoped memory for tpu_custom_call.1']
    #allocation7 [shape = 'u8[4096]{0}', space=vmem, size = 0x1000, scoped, tag = 'output window, operand 0, single buffered']
    %7 = vsyncpa [#allocation3], 0
    %8 = vsyncpa [#allocation6], 0
    %9 = vsyncpa [#allocation4], 0
    // Predicated region
    $region2: #{tpu_custom_call.1} parent=1 // pred_check
      _
    $region3: #{tpu_custom_call.1} parent=1 // pred_check_branch
      %11 = sbr.rel (0) target = $region5
    $region4: #{tpu_custom_call.1} parent=1 // pred_region
      %s13 = ssub.s32 128, 128
      %14 = vsyncadd [#allocation3], %s13
      %s15 = sshll.u32 [#allocation2], 4
      %s16 = int_to_ptr.vmem [resolvable:$true] %s15
      %21 = dma.hbm_to_vmem [thread:$0]  %s0, 128, %s16, [#allocation3], 64, 64, 4
    $region5: #{tpu_custom_call.1} parent=1 // pred_fallthru
      _
    // Predicated region
    $region6: #{tpu_custom_call.1} parent=1 // pred_check
      _
    $region7: #{tpu_custom_call.1} parent=1 // pred_check_branch
      %23 = sbr.rel (0) target = $region9
    $region8: #{tpu_custom_call.1} parent=1 // pred_region
      %s25 = ssub.s32 256, 256
      %26 = vsyncadd [#allocation6], %s25
      %s27 = sshll.u32 [#allocation5], 4
      %s28 = int_to_ptr.vmem [resolvable:$true] %s27
      %33 = dma.hbm_to_vmem [thread:$0]  %s1, 256, %s28, [#allocation6], 64, 64, 4
    $region9: #{tpu_custom_call.1} parent=1 // pred_fallthru
      _
    // Predicated region
    $region10: #{tpu_custom_call.1} parent=1 // pred_check
      _
    $region11: #{tpu_custom_call.1} parent=1 // pred_check_branch
      %35 = sbr.rel (0) target = $region13
    $region12: #{tpu_custom_call.1} parent=1 // pred_region
      %36 = dma.done [#allocation3], 128
    $region13: #{tpu_custom_call.1} parent=1 // pred_fallthru
      _
    // Predicated region
    $region14: #{tpu_custom_call.1} parent=1 // pred_check
      _
    $region15: #{tpu_custom_call.1} parent=1 // pred_check_branch
      %38 = sbr.rel (0) target = $region17
    $region16: #{tpu_custom_call.1} parent=1 // pred_region
      %39 = dma.done [#allocation6], 256
    $region17: #{tpu_custom_call.1} parent=1 // pred_fallthru
      _
    %v41 = vld [vmem:[#allocation2] sm:$0xf]
    %v42 = vld [vmem:[#allocation2 + $0x4] sm:$0xf]
    %v43 = vld [vmem:[#allocation5] sm:$0xf]
    %v44 = vld [vmem:[#allocation5 + $0x4] sm:$0xf]
    %v45 = vld [vmem:[#allocation5 + $0x8] sm:$0xf]
    %v46 = vld [vmem:[#allocation5 + $0xc] sm:$0xf]
    %v49 = vunpack.c.l.b16 %v41
    %v50 = vunpack.c.l.b16 %v42
    %v51 = vpack.c.b16 %v50, %v49
    %v56 = vunpack.c.l.b16 %v43
    %v57 = vunpack.c.l.b16 %v44
    %v58 = vunpack.c.l.b16 %v45
    %v59 = vunpack.c.l.b16 %v46
    %v60 = vpack.c.b16 %v57, %v56
    %v61 = vpack.c.b16 %v59, %v58
    %vm64 = vcmask 261120
    %v66 = vsel %vm64, %v51, 0
    %68 = vmatprep.subr.bf16.mxu0 0
    %69 = vmatpush1.bf16.msra.mxu0 0
    %70 = vmatprep.subr.bf16.mxu0 0
    %71 = vmatpush1.bf16.msra.mxu0 0
    %72 = vmatprep.subr.bf16.mxu0 0
    %73 = vmatpush1.bf16.msra.mxu0 0
    %74 = vmatprep.subr.bf16.mxu0 0
    %75 = vmatpush1.bf16.msra.mxu0 0
    %76 = vmatprep.subr.bf16.mxu0 0
    %77 = vmatpush1.bf16.msra.mxu0 0
    %78 = vmatprep.subr.bf16.mxu0 0
    %79 = vmatpush1.bf16.msra.mxu0 0
    %80 = vmatprep.subr.bf16.mxu0 0
    %81 = vmatpush1.bf16.msra.mxu0 %v61
    %82 = vmatprep.subr.bf16.mxu0 0
    %83 = vmatpush1.bf16.msra.mxu0 %v60
    %84 = vmatprep.subr.bf16.mxu0 0
    %85 = vmatpush2.bf16.msra.mxu0 0
    %86 = vmatprep.subr.bf16.mxu0 0
    %87 = vmatpush2.bf16.msra.mxu0 0
    %88 = vmatprep.subr.bf16.mxu0 0
    %89 = vmatpush2.bf16.msra.mxu0 0
    %90 = vmatprep.subr.bf16.mxu0 0
    %91 = vmatpush2.bf16.msra.mxu0 0
    %92 = vmatprep.subr.bf16.mxu0 0
    %93 = vmatpush2.bf16.msra.mxu0 0
    %94 = vmatprep.subr.bf16.mxu0 0
    %95 = vmatpush2.bf16.msra.mxu0 0
    %96 = vmatprep.subr.bf16.mxu0 0
    %97 = vmatpush2.bf16.msra.mxu0 0
    %98 = vmatprep.subr.bf16.mxu0 0
    %99 = vmatpush2.bf16.msra.mxu0 0
    %100 = vmatprep.mubr.bf16.mxu0 0
    %101 = vmatmul.mubr.bf16.gmra.mxu0 %v66
    %v102 = vpop.f32.mrf.mxu0
    %v103 = vadd.f32 0.0, %v102
    %v104 = vpop.f32.mrf.mxu0
    %v105 = vpop.f32.mrf.mxu0
    %v106 = vadd.f32 0.0, %v105
    %v107 = vpop.f32.mrf.mxu0
    %108 = vdwg.mxu0
    %v109 = vpack.c.bf16 %v106, %v103
    %v111 = vunpack.c.l.b16 %v109
    %v112 = vunpack.c.h.b16 %v109
    %v113 = vpack.c.b16 %v111, %v111
    %v114 = vpack.c.b16 %v112, %v112
    %vm117 = vcmask 781312
    %118 = vst.msk [vmem:[#allocation7] sm:$0xf] %vm117, %v113
    %119 = vst.msk [vmem:[#allocation7 + $0x4] sm:$0xf] %vm117, %v114
    // Predicated region
    $region18: #{tpu_custom_call.1} parent=1 // pred_check
      _
    $region19: #{tpu_custom_call.1} parent=1 // pred_check_branch
      %121 = sbr.rel (0) target = $region21
    $region20: #{tpu_custom_call.1} parent=1 // pred_region
      %s123 = ssub.s32 128, 128
      %124 = vsyncadd [#allocation4], %s123
      %s125 = sshll.u32 [#allocation7], 4
      %s126 = int_to_ptr.vmem [resolvable:$true] %s125
      %131 = dma.vmem_to_hbm [thread:$0]  %s126, 128, %s2, [#allocation4], 64, 64, 4
    $region21: #{tpu_custom_call.1} parent=1 // pred_fallthru
      _
    // Predicated region
    $region22: #{tpu_custom_call.1} parent=1 // pred_check
      _
    $region23: #{tpu_custom_call.1} parent=1 // pred_check_branch
      %133 = sbr.rel (0) target = $region25
    $region24: #{tpu_custom_call.1} parent=1 // pred_region
      %134 = dma.done [#allocation4], 128
    $region25: #{tpu_custom_call.1} parent=1 // pred_fallthru
      _
    %135 = vsyncpa [#allocation3], 1
    %136 = vsyncpa [#allocation6], 1
    %137 = vsyncpa [#allocation4], 1

</llo_original>
